<compile_context>
chip_gen: v5e
topology: v5e:2x2
jax: 0.10.0
libtpu: 0.0.40
codegen_flags: <defaults>
</compile_context>

<pallas_src>
import jax
import jax.numpy as jnp
import numpy as np
from jax.experimental import pallas as pl
from jax.experimental.pallas import tpu as pltpu

# Problem sizes (match the PyTorch module: channel=32, reduction=16, kernel=7).
B = 2
C = 32
RED = 16
MID = C // RED          # 2
H = 16
W = 16
HW = H * W              # 256 -> lane-dense last dim (multiple of 128)
KS = 7
PAD = (KS - 1) // 2     # 3


def _build_conv_matrix(wc):
    """Embed the Conv2d(2, 1, 7, padding=3, bias=False) 'SAME' conv as a dense
    (2*HW, HW) matrix K so that for flattened pooled maps
        lhs = [avg(HW) | max(HW)]  (per batch row),
    lhs @ K reproduces the conv output (boundary zero-padding folded in)."""
    ho, wo, dh, dw = np.meshgrid(np.arange(H), np.arange(W),
                                 np.arange(KS), np.arange(KS), indexing="ij")
    hs = ho + dh - PAD
    ws = wo + dw - PAD
    valid = (hs >= 0) & (hs < H) & (ws >= 0) & (ws < W)
    q = jnp.asarray((ho * W + wo)[valid])        # output flat pixel
    p = jnp.asarray((hs * W + ws)[valid])        # source flat pixel
    dh_v = jnp.asarray(dh[valid])
    dw_v = jnp.asarray(dw[valid])

    K = jnp.zeros((2 * HW, HW), jnp.float32)
    K = K.at[p, q].add(wc[0, 0, dh_v, dw_v])          # avg-channel taps
    K = K.at[HW + p, q].add(wc[0, 1, dh_v, dw_v])     # max-channel taps
    return K


def cbam_kernel(x_ref, w1_ref, w2_ref, k_ref, o_ref):
    # x_ref : (B, C, HW)     VMEM f32
    # w1_ref: (MID, C)       VMEM      Linear(C, C//16).weight
    # w2_ref: (C, MID)       VMEM      Linear(C//16, C).weight
    # k_ref : (2*HW, HW)     VMEM      dense 7x7 conv matrix (avg rows | max rows)
    # o_ref : (B, C, HW)     VMEM

    # ---------------- Channel attention: one fused matmul pair ----------------
    # pooled columns: [avg_0 .. avg_{B-1} | max_0 .. max_{B-1}]  -> (C, 2B)
    avg_cols = [jnp.mean(x_ref[b], axis=-1, keepdims=True) for b in range(B)]  # B x (C,1)
    max_cols = [jnp.max(x_ref[b], axis=-1, keepdims=True) for b in range(B)]   # B x (C,1)
    cands = avg_cols + max_cols
    col = jax.lax.broadcasted_iota(jnp.int32, (C, 2 * B), 1)
    pooled = cands[-1]
    for j in range(2 * B - 2, -1, -1):               # lane-select stack (no lane concat)
        pooled = jnp.where(col == j, cands[j], pooled)                          # (C, 2B)

    h = jnp.maximum(
        jnp.dot(w1_ref[...], pooled, preferred_element_type=jnp.float32), 0.0)  # (MID, 2B)
    f = jnp.dot(w2_ref[...], h, preferred_element_type=jnp.float32)             # (C, 2B)
    # fc(avg_b) + fc(max_b) per batch, then sigmoid
    y_ca = jax.nn.sigmoid(f[:, :B] + f[:, B:])                                   # (C, B)

    # -------- Apply channel attention; stage result through o_ref; pool --------
    lhs_rows = []
    for b in range(B):
        xab = x_ref[b] * y_ca[:, b:b + 1]                                        # (C, HW)
        o_ref[b] = xab.astype(o_ref.dtype)            # stage now, RMW at the end
        avg_row = jnp.mean(xab, axis=0, keepdims=True)                           # (1, HW)
        max_row = jnp.max(xab, axis=0, keepdims=True)                            # (1, HW)
        lhs_rows.append(jnp.concatenate([avg_row, max_row], axis=-1))            # (1, 2HW)
    lhs = jnp.concatenate(lhs_rows, axis=0)                                      # (B, 2HW)

    # ---------------- Spatial attention: 7x7 conv as one MXU matmul ----------------
    conv = jnp.dot(lhs, k_ref[...], preferred_element_type=jnp.float32)          # (B, HW)
    y_sp = jax.nn.sigmoid(conv)                                                  # (B, HW)

    for b in range(B):
        o_ref[b] = (o_ref[b] * y_sp[b:b + 1, :]).astype(o_ref.dtype)


def cbam_pallas(x, w1, w2, wc):
    """x: (B, C, H, W) f32; w1: (MID, C); w2: (C, MID); wc: (1, 2, KS, KS)."""
    assert x.shape == (B, C, H, W)
    x3 = x.reshape(B, C, HW)                  # lane-dense last dim (256)
    K = _build_conv_matrix(wc)                # (2*HW, HW) = (512, 256), 512 KiB f32

    out3 = pl.pallas_call(
        cbam_kernel,
        out_shape=jax.ShapeDtypeStruct((B, C, HW), x.dtype),
        in_specs=[
            pl.BlockSpec(memory_space=pltpu.MemorySpace.VMEM),   # x (whole batch)
            pl.BlockSpec(memory_space=pltpu.MemorySpace.VMEM),   # w1
            pl.BlockSpec(memory_space=pltpu.MemorySpace.VMEM),   # w2
            pl.BlockSpec(memory_space=pltpu.MemorySpace.VMEM),   # conv matrix K
        ],
        out_specs=pl.BlockSpec(memory_space=pltpu.MemorySpace.VMEM),
    )(x3, w1, w2, K)
    return out3.reshape(B, C, H, W)


def cbam_reference(x, w1, w2, wc):
    # Pure-JAX reference mirroring the PyTorch forward.
    avg = jnp.mean(x, axis=(2, 3))
    mx = jnp.max(x, axis=(2, 3))

    def fc(v):
        return jnp.maximum(v @ w1.T, 0.0) @ w2.T

    y = jax.nn.sigmoid(fc(avg) + fc(mx))               # (B, C)
    x = x * y[:, :, None, None]

    avg_sp = jnp.mean(x, axis=1, keepdims=True)
    max_sp = jnp.max(x, axis=1, keepdims=True)
    y2 = jnp.concatenate([avg_sp, max_sp], axis=1)     # (B, 2, H, W)
    conv = jax.lax.conv_general_dilated(
        y2, wc, window_strides=(1, 1), padding="SAME",
        dimension_numbers=("NCHW", "OIHW", "NCHW"))
    return x * jax.nn.sigmoid(conv)


if __name__ == "__main__":
    key = jax.random.PRNGKey(0)
    kx, k1, k2, kc = jax.random.split(key, 4)

    x = jax.random.normal(kx, (B, C, H, W), jnp.float32)
    # Deterministic synthetic parameters (shapes from the module's __init__):
    w1 = jax.random.normal(k1, (MID, C), jnp.float32) * 0.1        # Linear(C, C//16, bias=False)
    w2 = jax.random.normal(k2, (C, MID), jnp.float32) * 0.1        # Linear(C//16, C, bias=False)
    wc = jax.random.normal(kc, (1, 2, KS, KS), jnp.float32) * 0.1  # Conv2d(2, 1, 7, pad=3, bias=False)

    out = jax.block_until_ready(cbam_pallas(x, w1, w2, wc))
    ref = cbam_reference(x, w1, w2, wc)

    assert out.shape == ref.shape and out.dtype == ref.dtype
    max_err = float(jnp.max(jnp.abs(out - ref)))
    assert jnp.allclose(out, ref, atol=1e-4, rtol=1e-4), max_err

    print("KERNEL_OK")
</pallas_src>

<mosaic_0001>
module attributes {stable_mosaic.version = 11 : i64} {
  func.func @cbam_kernel(%arg0: memref<2x32x256xf32, #tpu.memory_space<vmem>>, %arg1: memref<2x32xf32, #tpu.memory_space<vmem>>, %arg2: memref<32x2xf32, #tpu.memory_space<vmem>>, %arg3: memref<512x256xf32, #tpu.memory_space<vmem>>, %arg4: memref<2x32x256xf32, #tpu.memory_space<vmem>>) attributes {dimension_semantics = [], scalar_prefetch = 0 : i64, scratch_operands = 0 : i64, tpu.core_type = #tpu.core_type<tc>} {
    %c0 = arith.constant 0 : index
    %c0_0 = arith.constant 0 : index
    %c0_1 = arith.constant 0 : index
    %0 = vector.load %arg0[%c0, %c0_0, %c0_1] : memref<2x32x256xf32, #tpu.memory_space<vmem>>, vector<1x32x256xf32>
    %1 = vector.shape_cast %0 : vector<1x32x256xf32> to vector<32x256xf32>
    %cst = arith.constant dense<0.000000e+00> : vector<32xf32>
    %2 = vector.multi_reduction <add>, %1, %cst [1] : vector<32x256xf32> to vector<32xf32>
    %3 = vector.shape_cast %2 : vector<32xf32> to vector<32x1xf32>
    %cst_2 = arith.constant 2.560000e+02 : f32
    %4 = vector.broadcast %cst_2 : f32 to vector<32x1xf32>
    %5 = arith.divf %3, %4 : vector<32x1xf32>
    %c1 = arith.constant 1 : index
    %c0_3 = arith.constant 0 : index
    %c0_4 = arith.constant 0 : index
    %6 = vector.load %arg0[%c1, %c0_3, %c0_4] : memref<2x32x256xf32, #tpu.memory_space<vmem>>, vector<1x32x256xf32>
    %7 = vector.shape_cast %6 : vector<1x32x256xf32> to vector<32x256xf32>
    %cst_5 = arith.constant dense<0.000000e+00> : vector<32xf32>
    %8 = vector.multi_reduction <add>, %7, %cst_5 [1] : vector<32x256xf32> to vector<32xf32>
    %9 = vector.shape_cast %8 : vector<32xf32> to vector<32x1xf32>
    %cst_6 = arith.constant 2.560000e+02 : f32
    %10 = vector.broadcast %cst_6 : f32 to vector<32x1xf32>
    %11 = arith.divf %9, %10 : vector<32x1xf32>
    %c0_7 = arith.constant 0 : index
    %c0_8 = arith.constant 0 : index
    %c0_9 = arith.constant 0 : index
    %12 = vector.load %arg0[%c0_7, %c0_8, %c0_9] : memref<2x32x256xf32, #tpu.memory_space<vmem>>, vector<1x32x256xf32>
    %13 = vector.shape_cast %12 : vector<1x32x256xf32> to vector<32x256xf32>
    %cst_10 = arith.constant dense<0xFF800000> : vector<32xf32>
    %14 = vector.multi_reduction <maximumf>, %13, %cst_10 [1] : vector<32x256xf32> to vector<32xf32>
    %15 = vector.shape_cast %14 : vector<32xf32> to vector<32x1xf32>
    %c1_11 = arith.constant 1 : index
    %c0_12 = arith.constant 0 : index
    %c0_13 = arith.constant 0 : index
    %16 = vector.load %arg0[%c1_11, %c0_12, %c0_13] : memref<2x32x256xf32, #tpu.memory_space<vmem>>, vector<1x32x256xf32>
    %17 = vector.shape_cast %16 : vector<1x32x256xf32> to vector<32x256xf32>
    %cst_14 = arith.constant dense<0xFF800000> : vector<32xf32>
    %18 = vector.multi_reduction <maximumf>, %17, %cst_14 [1] : vector<32x256xf32> to vector<32xf32>
    %19 = vector.shape_cast %18 : vector<32xf32> to vector<32x1xf32>
    %20 = tpu.iota {dimensions = array<i32: 1>} : vector<32x4xi32>
    %c2_i32 = arith.constant 2 : i32
    %21 = vector.broadcast %c2_i32 : i32 to vector<32x4xi32>
    %22 = arith.cmpi eq, %20, %21 : vector<32x4xi32>
    %23 = vector.shape_cast %15 : vector<32x1xf32> to vector<32x1xf32>
    %24 = vector.broadcast %23 : vector<32x1xf32> to vector<32x4xf32>
    %25 = vector.shape_cast %19 : vector<32x1xf32> to vector<32x1xf32>
    %26 = vector.broadcast %25 : vector<32x1xf32> to vector<32x4xf32>
    %27 = arith.select %22, %24, %26 : vector<32x4xi1>, vector<32x4xf32>
    %c1_i32 = arith.constant 1 : i32
    %28 = vector.broadcast %c1_i32 : i32 to vector<32x4xi32>
    %29 = arith.cmpi eq, %20, %28 : vector<32x4xi32>
    %30 = vector.shape_cast %11 : vector<32x1xf32> to vector<32x1xf32>
    %31 = vector.broadcast %30 : vector<32x1xf32> to vector<32x4xf32>
    %32 = arith.select %29, %31, %27 : vector<32x4xi1>, vector<32x4xf32>
    %c0_i32 = arith.constant 0 : i32
    %33 = vector.broadcast %c0_i32 : i32 to vector<32x4xi32>
    %34 = arith.cmpi eq, %20, %33 : vector<32x4xi32>
    %35 = vector.shape_cast %5 : vector<32x1xf32> to vector<32x1xf32>
    %36 = vector.broadcast %35 : vector<32x1xf32> to vector<32x4xf32>
    %37 = arith.select %34, %36, %32 : vector<32x4xi1>, vector<32x4xf32>
    %c0_15 = arith.constant 0 : index
    %c0_16 = arith.constant 0 : index
    %38 = vector.load %arg1[%c0_15, %c0_16] : memref<2x32xf32, #tpu.memory_space<vmem>>, vector<2x32xf32>
    %cst_17 = arith.constant dense<0.000000e+00> : vector<2x4xf32>
    %39 = tpu.matmul %38, %37, %cst_17 {dimension_numbers = #tpu.dot_dimension_numbers<[1], [0], [0], [1], [0, 0, 1, 1], [], []>} : vector<2x32xf32>, vector<32x4xf32>, vector<2x4xf32> -> vector<2x4xf32>
    %cst_18 = arith.constant 0.000000e+00 : f32
    %40 = vector.broadcast %cst_18 : f32 to vector<2x4xf32>
    %41 = arith.maximumf %39, %40 : vector<2x4xf32>
    %c0_19 = arith.constant 0 : index
    %c0_20 = arith.constant 0 : index
    %42 = vector.load %arg2[%c0_19, %c0_20] : memref<32x2xf32, #tpu.memory_space<vmem>>, vector<32x2xf32>
    %cst_21 = arith.constant dense<0.000000e+00> : vector<32x4xf32>
    %43 = tpu.matmul %42, %41, %cst_21 {dimension_numbers = #tpu.dot_dimension_numbers<[1], [0], [0], [1], [0, 0, 1, 1], [], []>} : vector<32x2xf32>, vector<2x4xf32>, vector<32x4xf32> -> vector<32x4xf32>
    %44 = vector.extract_strided_slice %43 {offsets = [0, 0], sizes = [32, 2], strides = [1, 1]} : vector<32x4xf32> to vector<32x2xf32>
    %45 = vector.extract_strided_slice %43 {offsets = [0, 2], sizes = [32, 2], strides = [1, 1]} : vector<32x4xf32> to vector<32x2xf32>
    %46 = arith.addf %44, %45 : vector<32x2xf32>
    %47 = arith.negf %46 : vector<32x2xf32>
    %48 = math.exp %47 : vector<32x2xf32>
    %cst_22 = arith.constant 1.000000e+00 : f32
    %49 = vector.broadcast %cst_22 : f32 to vector<32x2xf32>
    %50 = arith.addf %49, %48 : vector<32x2xf32>
    %51 = arith.divf %49, %50 : vector<32x2xf32>
    %c0_23 = arith.constant 0 : index
    %c0_24 = arith.constant 0 : index
    %c0_25 = arith.constant 0 : index
    %52 = vector.load %arg0[%c0_23, %c0_24, %c0_25] : memref<2x32x256xf32, #tpu.memory_space<vmem>>, vector<1x32x256xf32>
    %53 = vector.shape_cast %52 : vector<1x32x256xf32> to vector<32x256xf32>
    %54 = vector.extract_strided_slice %51 {offsets = [0, 0], sizes = [32, 1], strides = [1, 1]} : vector<32x2xf32> to vector<32x1xf32>
    %55 = vector.broadcast %54 : vector<32x1xf32> to vector<32x256xf32>
    %56 = arith.mulf %53, %55 : vector<32x256xf32>
    %c0_26 = arith.constant 0 : index
    %c0_27 = arith.constant 0 : index
    %c0_28 = arith.constant 0 : index
    %57 = vector.load %arg4[%c0_26, %c0_27, %c0_28] : memref<2x32x256xf32, #tpu.memory_space<vmem>>, vector<1x32x256xf32>
    %58 = vector.shape_cast %57 : vector<1x32x256xf32> to vector<32x256xf32>
    %59 = vector.shape_cast %56 : vector<32x256xf32> to vector<1x32x256xf32>
    tpu.vector_store %arg4[%c0_26, %c0_27, %c0_28], %59 {strides = array<i32>} : memref<2x32x256xf32, #tpu.memory_space<vmem>>, vector<1x32x256xf32>,
    %cst_29 = arith.constant dense<0.000000e+00> : vector<256xf32>
    %60 = vector.multi_reduction <add>, %56, %cst_29 [0] : vector<32x256xf32> to vector<256xf32>
    %61 = vector.shape_cast %60 : vector<256xf32> to vector<1x256xf32>
    %cst_30 = arith.constant 3.200000e+01 : f32
    %62 = vector.broadcast %cst_30 : f32 to vector<1x256xf32>
    %63 = arith.divf %61, %62 : vector<1x256xf32>
    %cst_31 = arith.constant dense<0xFF800000> : vector<256xf32>
    %64 = vector.multi_reduction <maximumf>, %56, %cst_31 [0] : vector<32x256xf32> to vector<256xf32>
    %65 = vector.shape_cast %64 : vector<256xf32> to vector<1x256xf32>
    %66 = tpu.concatenate %63, %65 in 1 : vector<1x256xf32>, vector<1x256xf32> -> vector<1x512xf32>
    %c1_32 = arith.constant 1 : index
    %c0_33 = arith.constant 0 : index
    %c0_34 = arith.constant 0 : index
    %67 = vector.load %arg0[%c1_32, %c0_33, %c0_34] : memref<2x32x256xf32, #tpu.memory_space<vmem>>, vector<1x32x256xf32>
    %68 = vector.shape_cast %67 : vector<1x32x256xf32> to vector<32x256xf32>
    %69 = vector.extract_strided_slice %51 {offsets = [0, 1], sizes = [32, 1], strides = [1, 1]} : vector<32x2xf32> to vector<32x1xf32>
    %70 = vector.broadcast %69 : vector<32x1xf32> to vector<32x256xf32>
    %71 = arith.mulf %68, %70 : vector<32x256xf32>
    %c1_35 = arith.constant 1 : index
    %c0_36 = arith.constant 0 : index
    %c0_37 = arith.constant 0 : index
    %72 = vector.load %arg4[%c1_35, %c0_36, %c0_37] : memref<2x32x256xf32, #tpu.memory_space<vmem>>, vector<1x32x256xf32>
    %73 = vector.shape_cast %72 : vector<1x32x256xf32> to vector<32x256xf32>
    %74 = vector.shape_cast %71 : vector<32x256xf32> to vector<1x32x256xf32>
    tpu.vector_store %arg4[%c1_35, %c0_36, %c0_37], %74 {strides = array<i32>} : memref<2x32x256xf32, #tpu.memory_space<vmem>>, vector<1x32x256xf32>,
    %cst_38 = arith.constant dense<0.000000e+00> : vector<256xf32>
    %75 = vector.multi_reduction <add>, %71, %cst_38 [0] : vector<32x256xf32> to vector<256xf32>
    %76 = vector.shape_cast %75 : vector<256xf32> to vector<1x256xf32>
    %cst_39 = arith.constant 3.200000e+01 : f32
    %77 = vector.broadcast %cst_39 : f32 to vector<1x256xf32>
    %78 = arith.divf %76, %77 : vector<1x256xf32>
    %cst_40 = arith.constant dense<0xFF800000> : vector<256xf32>
    %79 = vector.multi_reduction <maximumf>, %71, %cst_40 [0] : vector<32x256xf32> to vector<256xf32>
    %80 = vector.shape_cast %79 : vector<256xf32> to vector<1x256xf32>
    %81 = tpu.concatenate %78, %80 in 1 : vector<1x256xf32>, vector<1x256xf32> -> vector<1x512xf32>
    %82 = tpu.concatenate %66, %81 in 0 : vector<1x512xf32>, vector<1x512xf32> -> vector<2x512xf32>
    %c0_41 = arith.constant 0 : index
    %c0_42 = arith.constant 0 : index
    %83 = vector.load %arg3[%c0_41, %c0_42] : memref<512x256xf32, #tpu.memory_space<vmem>>, vector<512x256xf32>
    %cst_43 = arith.constant dense<0.000000e+00> : vector<2x256xf32>
    %84 = tpu.matmul %82, %83, %cst_43 {dimension_numbers = #tpu.dot_dimension_numbers<[1], [0], [0], [1], [0, 0, 1, 1], [], []>} : vector<2x512xf32>, vector<512x256xf32>, vector<2x256xf32> -> vector<2x256xf32>
    %85 = arith.negf %84 : vector<2x256xf32>
    %86 = math.exp %85 : vector<2x256xf32>
    %cst_44 = arith.constant 1.000000e+00 : f32
    %87 = vector.broadcast %cst_44 : f32 to vector<2x256xf32>
    %88 = arith.addf %87, %86 : vector<2x256xf32>
    %89 = arith.divf %87, %88 : vector<2x256xf32>
    %c0_45 = arith.constant 0 : index
    %c0_46 = arith.constant 0 : index
    %c0_47 = arith.constant 0 : index
    %90 = vector.load %arg4[%c0_45, %c0_46, %c0_47] : memref<2x32x256xf32, #tpu.memory_space<vmem>>, vector<1x32x256xf32>
    %91 = vector.shape_cast %90 : vector<1x32x256xf32> to vector<32x256xf32>
    %92 = vector.extract_strided_slice %89 {offsets = [0, 0], sizes = [1, 256], strides = [1, 1]} : vector<2x256xf32> to vector<1x256xf32>
    %93 = vector.broadcast %92 : vector<1x256xf32> to vector<32x256xf32>
    %94 = arith.mulf %91, %93 : vector<32x256xf32>
    %c0_48 = arith.constant 0 : index
    %c0_49 = arith.constant 0 : index
    %c0_50 = arith.constant 0 : index
    %95 = vector.load %arg4[%c0_48, %c0_49, %c0_50] : memref<2x32x256xf32, #tpu.memory_space<vmem>>, vector<1x32x256xf32>
    %96 = vector.shape_cast %95 : vector<1x32x256xf32> to vector<32x256xf32>
    %97 = vector.shape_cast %94 : vector<32x256xf32> to vector<1x32x256xf32>
    tpu.vector_store %arg4[%c0_48, %c0_49, %c0_50], %97 {strides = array<i32>} : memref<2x32x256xf32, #tpu.memory_space<vmem>>, vector<1x32x256xf32>,
    %c1_51 = arith.constant 1 : index
    %c0_52 = arith.constant 0 : index
    %c0_53 = arith.constant 0 : index
    %98 = vector.load %arg4[%c1_51, %c0_52, %c0_53] : memref<2x32x256xf32, #tpu.memory_space<vmem>>, vector<1x32x256xf32>
    %99 = vector.shape_cast %98 : vector<1x32x256xf32> to vector<32x256xf32>
    %100 = vector.extract_strided_slice %89 {offsets = [1, 0], sizes = [1, 256], strides = [1, 1]} : vector<2x256xf32> to vector<1x256xf32>
    %101 = vector.broadcast %100 : vector<1x256xf32> to vector<32x256xf32>
    %102 = arith.mulf %99, %101 : vector<32x256xf32>
    %c1_54 = arith.constant 1 : index
    %c0_55 = arith.constant 0 : index
    %c0_56 = arith.constant 0 : index
    %103 = vector.load %arg4[%c1_54, %c0_55, %c0_56] : memref<2x32x256xf32, #tpu.memory_space<vmem>>, vector<1x32x256xf32>
    %104 = vector.shape_cast %103 : vector<1x32x256xf32> to vector<32x256xf32>
    %105 = vector.shape_cast %102 : vector<32x256xf32> to vector<1x32x256xf32>
    tpu.vector_store %arg4[%c1_54, %c0_55, %c0_56], %105 {strides = array<i32>} : memref<2x32x256xf32, #tpu.memory_space<vmem>>, vector<1x32x256xf32>,
    return
  }
}

</mosaic_0001>

<llo_original>
// kernel: tpu_custom_call.1
$region0: #{tpu_custom_call.1}
  #allocation0 [shape = 'u32[]', space=smem, size = 0x4, offset = 0x4, fixed_abs, tag = 'smem constant byte address 0x4 - core index']
  #allocation1 [shape = 'u32[72,128]{1,0:T(1,128)}', space=vmem, size = 0x9000, scoped, tag = 'internal scratch']
  %s0 = inlined_call_operand.hbm [shape: f32[2,32,256], index: 0, kind: input, shape index: {}]
  %s1 = inlined_call_operand.vmem [shape: f32[2,32], index: 1, kind: input, shape index: {}]
  %s2 = inlined_call_operand.vmem [shape: f32[32,2], index: 2, kind: input, shape index: {}]
  %s3 = inlined_call_operand.hbm [shape: f32[512,256], index: 3, kind: input, shape index: {}]
  %s4 = inlined_call_operand.hbm [shape: f32[2,32,256], index: 4, kind: output, shape index: {}]
  %s5 = sld [smem:[#allocation0]]
  $region34: #{tpu_custom_call.1} parent=0
    _
  %s7 = ssub.s32 1, %s5
  %s8 = scalar_select 0, %s7, %s5
  $region1: #{tpu_custom_call.1} parent=0
    #allocation2 [shape = 'u8[65536]{0}', space=vmem, size = 0x10000, scoped, tag = 'input window, operand 0, single buffered']
    #allocation3 [shape = 's32[1]{0}', space=sflag, size = 0x4, scoped, tag = 'scoped memory for tpu_custom_call.1']
    #allocation4 [shape = 's32[1]{0}', space=sflag, size = 0x4, scoped, tag = 'scoped memory for tpu_custom_call.1']
    #allocation5 [shape = 'u8[524288]{0}', space=vmem, size = 0x80000, scoped, tag = 'input window, operand 3, single buffered']
    #allocation6 [shape = 's32[1]{0}', space=sflag, size = 0x4, scoped, tag = 'scoped memory for tpu_custom_call.1']
    #allocation7 [shape = 'u8[65536]{0}', space=vmem, size = 0x10000, scoped, tag = 'output window, operand 0, single buffered']
    %9 = vsyncpa [#allocation3], 0
    %10 = vsyncpa [#allocation6], 0
    %11 = vsyncpa [#allocation4], 0
    // Predicated region
    $region2: #{tpu_custom_call.1} parent=1 // pred_check
      _
    $region3: #{tpu_custom_call.1} parent=1 // pred_check_branch
      %13 = sbr.rel (0) target = $region5
    $region4: #{tpu_custom_call.1} parent=1 // pred_region
      %15 = vsyncadd [#allocation3], 0
      %s16 = sshll.u32 %s0, 4
      %s17 = int_to_ptr.hbm [resolvable:$true] %s16
      %s18 = sshll.u32 [#allocation2], 4
      %s19 = int_to_ptr.vmem [resolvable:$true] %s18
      %24 = dma.hbm_to_vmem [thread:$0]  %s17, 2048, %s19, [#allocation3], 256, 256, 16
    $region5: #{tpu_custom_call.1} parent=1 // pred_fallthru
      _
    // Predicated region
    $region6: #{tpu_custom_call.1} parent=1 // pred_check
      _
    $region7: #{tpu_custom_call.1} parent=1 // pred_check_branch
      %26 = sbr.rel (0) target = $region9
    $region8: #{tpu_custom_call.1} parent=1 // pred_region
      _
    $region9: #{tpu_custom_call.1} parent=1 // pred_fallthru
      _
    // Predicated region
    $region10: #{tpu_custom_call.1} parent=1 // pred_check
      _
    $region11: #{tpu_custom_call.1} parent=1 // pred_check_branch
      %28 = sbr.rel (0) target = $region13
    $region12: #{tpu_custom_call.1} parent=1 // pred_region
      _
    $region13: #{tpu_custom_call.1} parent=1 // pred_fallthru
      _
    // Predicated region
    $region14: #{tpu_custom_call.1} parent=1 // pred_check
      _
    $region15: #{tpu_custom_call.1} parent=1 // pred_check_branch
      %30 = sbr.rel (0) target = $region17
    $region16: #{tpu_custom_call.1} parent=1 // pred_region
      %32 = vsyncadd [#allocation6], 0
      %s33 = sshll.u32 %s3, 4
      %s34 = int_to_ptr.hbm [resolvable:$true] %s33
      %s35 = sshll.u32 [#allocation5], 4
      %s36 = int_to_ptr.vmem [resolvable:$true] %s35
      %41 = dma.hbm_to_vmem [thread:$0]  %s34, 16384, %s36, [#allocation6], 256, 256, 16
    $region17: #{tpu_custom_call.1} parent=1 // pred_fallthru
      _
    // Predicated region
    $region18: #{tpu_custom_call.1} parent=1 // pred_check
      _
    $region19: #{tpu_custom_call.1} parent=1 // pred_check_branch
      %43 = sbr.rel (0) target = $region21
    $region20: #{tpu_custom_call.1} parent=1 // pred_region
      %45 = dma.done [#allocation3], 2048
    $region21: #{tpu_custom_call.1} parent=1 // pred_fallthru
      _
    // Predicated region
    $region22: #{tpu_custom_call.1} parent=1 // pred_check
      _
    $region23: #{tpu_custom_call.1} parent=1 // pred_check_branch
      %47 = sbr.rel (0) target = $region25
    $region24: #{tpu_custom_call.1} parent=1 // pred_region
      %49 = dma.done [#allocation6], 16384
    $region25: #{tpu_custom_call.1} parent=1 // pred_fallthru
      _
    %v50 = vld [vmem:[#allocation2] sm:$0xff]
    %v51 = vld [vmem:[#allocation2 + $0x8] sm:$0xff]
    %v52 = vld [vmem:[#allocation2 + $0x10] sm:$0xff]
    %v53 = vld [vmem:[#allocation2 + $0x18] sm:$0xff]
    %v54 = vld [vmem:[#allocation2 + $0x20] sm:$0xff]
    %v55 = vld [vmem:[#allocation2 + $0x28] sm:$0xff]
    %v56 = vld [vmem:[#allocation2 + $0x30] sm:$0xff]
    %v57 = vld [vmem:[#allocation2 + $0x38] sm:$0xff]
    %v58 = vadd.f32 %v50, %v51
    %59 = vadd.xlane.f32.xlu0 %v58
    %v60 = vpop.xlane.xlu0 %59
    %v61 = vadd.f32 %v52, %v53
    %62 = vadd.xlane.f32.xlu0 %v61
    %v63 = vpop.xlane.xlu0 %62
    %v64 = vadd.f32 %v54, %v55
    %65 = vadd.xlane.f32.xlu0 %v64
    %v66 = vpop.xlane.xlu0 %65
    %v67 = vadd.f32 %v56, %v57
    %68 = vadd.xlane.f32.xlu0 %v67
    %v69 = vpop.xlane.xlu0 %68
    %v70 = vrcp.pop 256.0
    %v71 = vmul.f32 256.0, %v70
    %v72 = vsub.f32 1.0, %v71
    %v73 = vmul.f32 %v70, %v72
    %v74 = vadd.f32 %v70, %v73
    %vm75 = vweird.f32 %v70
    %v76 = vsel %vm75, %v70, %v74
    %v77 = vmul.f32 %v60, %v76
    %v78 = vmul.f32 %v63, %v76
    %v79 = vmul.f32 %v66, %v76
    %v80 = vmul.f32 %v69, %v76
    %s81 = scalar_lea.vmem [#allocation2], 64
    %v82 = vld [vmem:[%s81] sm:$0xff]
    %v83 = vld [vmem:[%s81 + $0x8] sm:$0xff]
    %v84 = vld [vmem:[%s81 + $0x10] sm:$0xff]
    %v85 = vld [vmem:[%s81 + $0x18] sm:$0xff]
    %v86 = vld [vmem:[%s81 + $0x20] sm:$0xff]
    %v87 = vld [vmem:[%s81 + $0x28] sm:$0xff]
    %v88 = vld [vmem:[%s81 + $0x30] sm:$0xff]
    %v89 = vld [vmem:[%s81 + $0x38] sm:$0xff]
    %v90 = vadd.f32 %v82, %v83
    %91 = vadd.xlane.f32.xlu0 %v90
    %v92 = vpop.xlane.xlu0 %91
    %v93 = vadd.f32 %v84, %v85
    %94 = vadd.xlane.f32.xlu0 %v93
    %v95 = vpop.xlane.xlu0 %94
    %v96 = vadd.f32 %v86, %v87
    %97 = vadd.xlane.f32.xlu0 %v96
    %v98 = vpop.xlane.xlu0 %97
    %v99 = vadd.f32 %v88, %v89
    %100 = vadd.xlane.f32.xlu0 %v99
    %v101 = vpop.xlane.xlu0 %100
    %v102 = vmul.f32 %v92, %v76
    %v103 = vmul.f32 %v95, %v76
    %v104 = vmul.f32 %v98, %v76
    %v105 = vmul.f32 %v101, %v76
    %v106 = vmax.f32 %v50, %v51
    %107 = vmax.xlane.f32.xlu0 %v106
    %v108 = vpop.xlane.xlu0 %107
    %v109 = vmax.f32 %v52, %v53
    %110 = vmax.xlane.f32.xlu0 %v109
    %v111 = vpop.xlane.xlu0 %110
    %v112 = vmax.f32 %v54, %v55
    %113 = vmax.xlane.f32.xlu0 %v112
    %v114 = vpop.xlane.xlu0 %113
    %v115 = vmax.f32 %v56, %v57
    %116 = vmax.xlane.f32.xlu0 %v115
    %v117 = vpop.xlane.xlu0 %116
    %v118 = vmax.f32 %v82, %v83
    %119 = vmax.xlane.f32.xlu0 %v118
    %v120 = vpop.xlane.xlu0 %119
    %v121 = vmax.f32 %v84, %v85
    %122 = vmax.xlane.f32.xlu0 %v121
    %v123 = vpop.xlane.xlu0 %122
    %v124 = vmax.f32 %v86, %v87
    %125 = vmax.xlane.f32.xlu0 %v124
    %v126 = vpop.xlane.xlu0 %125
    %v127 = vmax.f32 %v88, %v89
    %128 = vmax.xlane.f32.xlu0 %v127
    %v129 = vpop.xlane.xlu0 %128
    %v130 = vlaneseq
    %v131 = vand.u32 %v130, 127
    %vm132 = vcmp.eq.s32.totalorder %v131, 2
    %v133 = vsel %vm132, %v108, %v120
    %v134 = vsel %vm132, %v111, %v123
    %v135 = vsel %vm132, %v114, %v126
    %v136 = vsel %vm132, %v117, %v129
    %vm137 = vcmp.eq.s32.totalorder %v131, 1
    %v138 = vsel %vm137, %v102, %v133
    %v139 = vsel %vm137, %v103, %v134
    %v140 = vsel %vm137, %v104, %v135
    %v141 = vsel %vm137, %v105, %v136
    %vm142 = vcmp.eq.s32.totalorder %v131, 0
    %v143 = vsel %vm142, %v77, %v138
    %v144 = vsel %vm142, %v78, %v139
    %v145 = vsel %vm142, %v79, %v140
    %v146 = vsel %vm142, %v80, %v141
    %v147 = vld [vmem:[%s1] sm:$0x3]
    %vm148 = vcmask 261120
    %v150 = vsel %vm148, %v147, 0
    %152 = vmatpush.msra.mxu0 0.0
    %153 = vmatpush.msra.mxu0 0.0
    %154 = vmatpush.msra.mxu0 0.0
    %155 = vmatpush.msra.mxu0 0.0
    %156 = vmatpush.msra.mxu0 0.0
    %157 = vmatpush.msra.mxu0 0.0
    %158 = vmatpush.msra.mxu0 0.0
    %159 = vmatpush.msra.mxu0 0.0
    %160 = vmatpush.msra.mxu0 0.0
    %161 = vmatpush.msra.mxu0 0.0
    %162 = vmatpush.msra.mxu0 0.0
    %163 = vmatpush.msra.mxu0 0.0
    %164 = vmatpush.msra.mxu0 %v146
    %165 = vmatpush.msra.mxu0 %v145
    %166 = vmatpush.msra.mxu0 %v144
    %167 = vmatpush.msra.mxu0 %v143
    %168 = vmatmul.f32.gmra.mxu0 %v150
    %v169 = vpop.f32.mrf.mxu0
    %v170 = vadd.f32 0.0, %v169
    %171 = vdwg.mxu0
    %v172 = vmax.f32 %v170, 0.0
    %v173 = vld [vmem:[%s2] sm:$0xff]
    %v174 = vld [vmem:[%s2 + $0x8] sm:$0xff]
    %v175 = vld [vmem:[%s2 + $0x10] sm:$0xff]
    %v176 = vld [vmem:[%s2 + $0x18] sm:$0xff]
    %vm177 = vcmask 15360
    %v179 = vsel %vm177, %v173, 0
    %v182 = vsel %vm177, %v174, 0
    %v185 = vsel %vm177, %v175, 0
    %v188 = vsel %vm177, %v176, 0
    %vm190 = vcmask 1041408
    %v192 = vsel %vm190, %v172, 0
    %194 = vmatpush.msra.mxu0 0.0
    %195 = vmatpush.msra.mxu0 0.0
    %196 = vmatpush.msra.mxu0 0.0
    %197 = vmatpush.msra.mxu0 0.0
    %198 = vmatpush.msra.mxu0 0.0
    %199 = vmatpush.msra.mxu0 0.0
    %200 = vmatpush.msra.mxu0 0.0
    %201 = vmatpush.msra.mxu0 0.0
    %202 = vmatpush.msra.mxu0 0.0
    %203 = vmatpush.msra.mxu0 0.0
    %204 = vmatpush.msra.mxu0 0.0
    %205 = vmatpush.msra.mxu0 0.0
    %206 = vmatpush.msra.mxu0 0.0
    %207 = vmatpush.msra.mxu0 0.0
    %208 = vmatpush.msra.mxu0 0.0
    %209 = vmatpush.msra.mxu0 %v192
    %210 = vmatmul.f32.gmra.mxu0 %v179
    %v211 = vpop.f32.mrf.mxu0
    %v212 = vadd.f32 0.0, %v211
    %213 = vmatmul.f32.gmra.mxu0 %v182
    %v214 = vpop.f32.mrf.mxu0
    %v215 = vadd.f32 0.0, %v214
    %216 = vmatmul.f32.gmra.mxu0 %v185
    %v217 = vpop.f32.mrf.mxu0
    %v218 = vadd.f32 0.0, %v217
    %219 = vmatmul.f32.gmra.mxu0 %v188
    %v220 = vpop.f32.mrf.mxu0
    %v221 = vadd.f32 0.0, %v220
    %222 = vdwg.mxu0
    %227 = vrot.lane.b32.xlu0 %v212, 126
    %v228 = vpop.permute.xlu0 %227
    %229 = vrot.lane.b32.xlu0 %v215, 126
    %v230 = vpop.permute.xlu0 %229
    %231 = vrot.lane.b32.xlu0 %v218, 126
    %v232 = vpop.permute.xlu0 %231
    %233 = vrot.lane.b32.xlu0 %v221, 126
    %v234 = vpop.permute.xlu0 %233
    %v239 = vadd.f32 %v212, %v228
    %v240 = vadd.f32 %v215, %v230
    %v241 = vadd.f32 %v218, %v232
    %v242 = vadd.f32 %v221, %v234
    %v243 = vxor.u32 %v239, 2147483648
    %v244 = vxor.u32 %v240, 2147483648
    %v245 = vxor.u32 %v241, 2147483648
    %v246 = vxor.u32 %v242, 2147483648
    %v247 = vmul.f32 %v243, 1.442695
    %v248 = vpow.pop %v247
    %v249 = vmul.f32 %v244, 1.442695
    %v250 = vpow.pop %v249
    %v251 = vmul.f32 %v245, 1.442695
    %v252 = vpow.pop %v251
    %v253 = vmul.f32 %v246, 1.442695
    %v254 = vpow.pop %v253
    %v255 = vadd.f32 %v248, 1.0
    %v256 = vadd.f32 %v250, 1.0
    %v257 = vadd.f32 %v252, 1.0
    %v258 = vadd.f32 %v254, 1.0
    %v259 = vrcp.pop %v255
    %v260 = vmul.f32 %v255, %v259
    %v261 = vsub.f32 1.0, %v260
    %v262 = vmul.f32 %v259, %v261
    %v263 = vadd.f32 %v259, %v262
    %vm264 = vweird.f32 %v255
    %vm265 = vweird.f32 %v259
    %vm266 = vmor %vm264, %vm265
    %v267 = vsel %vm266, %v259, %v263
    %v268 = vand.u32 2147483647, %v255
    %vm269 = vcmp.eq.f32.partialorder %v268, 8.507059e+37
    %v270 = vand.u32 %v255, 2147483648
    %v271 = vor.u32 1.1754944e-38, %v270
    %v272 = vsel %vm269, %v271, %v267
    %v273 = vmul.f32 1.0, %v272
    %v274 = vrcp.pop %v256
    %v275 = vmul.f32 %v256, %v274
    %v276 = vsub.f32 1.0, %v275
    %v277 = vmul.f32 %v274, %v276
    %v278 = vadd.f32 %v274, %v277
    %vm279 = vweird.f32 %v256
    %vm280 = vweird.f32 %v274
    %vm281 = vmor %vm279, %vm280
    %v282 = vsel %vm281, %v274, %v278
    %v283 = vand.u32 2147483647, %v256
    %vm284 = vcmp.eq.f32.partialorder %v283, 8.507059e+37
    %v285 = vand.u32 %v256, 2147483648
    %v286 = vor.u32 1.1754944e-38, %v285
    %v287 = vsel %vm284, %v286, %v282
    %v288 = vmul.f32 1.0, %v287
    %v289 = vrcp.pop %v257
    %v290 = vmul.f32 %v257, %v289
    %v291 = vsub.f32 1.0, %v290
    %v292 = vmul.f32 %v289, %v291
    %v293 = vadd.f32 %v289, %v292
    %vm294 = vweird.f32 %v257
    %vm295 = vweird.f32 %v289
    %vm296 = vmor %vm294, %vm295
    %v297 = vsel %vm296, %v289, %v293
    %v298 = vand.u32 2147483647, %v257
    %vm299 = vcmp.eq.f32.partialorder %v298, 8.507059e+37
    %v300 = vand.u32 %v257, 2147483648
    %v301 = vor.u32 1.1754944e-38, %v300
    %v302 = vsel %vm299, %v301, %v297
    %v303 = vmul.f32 1.0, %v302
    %v304 = vrcp.pop %v258
    %v305 = vmul.f32 %v258, %v304
    %v306 = vsub.f32 1.0, %v305
    %v307 = vmul.f32 %v304, %v306
    %v308 = vadd.f32 %v304, %v307
    %vm309 = vweird.f32 %v258
    %vm310 = vweird.f32 %v304
    %vm311 = vmor %vm309, %vm310
    %v312 = vsel %vm311, %v304, %v308
    %v313 = vand.u32 2147483647, %v258
    %vm314 = vcmp.eq.f32.partialorder %v313, 8.507059e+37
    %v315 = vand.u32 %v258, 2147483648
    %v316 = vor.u32 1.1754944e-38, %v315
    %v317 = vsel %vm314, %v316, %v312
    %v318 = vmul.f32 1.0, %v317
    %320 = vset.pattern.permute.xlu0 0
    %321 = vperm.xlu0 %320, %v273
    %v322 = vpop.permute.xlu0 %321
    %325 = vset.pattern.permute.xlu0 0
    %326 = vperm.xlu0 %325, %v288
    %v327 = vpop.permute.xlu0 %326
    %330 = vset.pattern.permute.xlu0 0
    %331 = vperm.xlu0 %330, %v303
    %v332 = vpop.permute.xlu0 %331
    %335 = vset.pattern.permute.xlu0 0
    %336 = vperm.xlu0 %335, %v318
    %v337 = vpop.permute.xlu0 %336
    %v339 = vmul.f32 %v50, %v322
    %v340 = vmul.f32 %v51, %v322
    %v341 = vmul.f32 %v52, %v327
    %v342 = vmul.f32 %v53, %v327
    %v343 = vmul.f32 %v54, %v332
    %v344 = vmul.f32 %v55, %v332
    %v345 = vmul.f32 %v56, %v337
    %v346 = vmul.f32 %v57, %v337
    %347 = vst [vmem:[#allocation7] sm:$0xff] %v339
    %348 = vst [vmem:[#allocation7 + $0x8] sm:$0xff] %v340
    %349 = vst [vmem:[#allocation7 + $0x10] sm:$0xff] %v341
    %350 = vst [vmem:[#allocation7 + $0x18] sm:$0xff] %v342
    %351 = vst [vmem:[#allocation7 + $0x20] sm:$0xff] %v343
    %352 = vst [vmem:[#allocation7 + $0x28] sm:$0xff] %v344
    %353 = vst [vmem:[#allocation7 + $0x30] sm:$0xff] %v345
    %354 = vst [vmem:[#allocation7 + $0x38] sm:$0xff] %v346
    %v355 = vadd.f32 %v339, %v341
    %v356 = vadd.f32 %v355, %v343
    %v357 = vadd.f32 %v356, %v345
    %v358 = vrot.slane %v357, 4
    %v359 = vadd.f32 %v357, %v358
    %v360 = vrot.slane %v359, 2
    %v361 = vadd.f32 %v359, %v360
    %v362 = vrot.slane %v361, 1
    %v363 = vadd.f32 %v361, %v362
    %v364 = vadd.f32 %v340, %v342
    %v365 = vadd.f32 %v364, %v344
    %v366 = vadd.f32 %v365, %v346
    %v367 = vrot.slane %v366, 4
    %v368 = vadd.f32 %v366, %v367
    %v369 = vrot.slane %v368, 2
    %v370 = vadd.f32 %v368, %v369
    %v371 = vrot.slane %v370, 1
    %v372 = vadd.f32 %v370, %v371
    %v373 = vrcp.pop 32.0
    %v374 = vmul.f32 32.0, %v373
    %v375 = vsub.f32 1.0, %v374
    %v376 = vmul.f32 %v373, %v375
    %v377 = vadd.f32 %v373, %v376
    %vm378 = vweird.f32 %v373
    %v379 = vsel %vm378, %v373, %v377
    %v380 = vmul.f32 %v363, %v379
    %v381 = vmul.f32 %v372, %v379
    %v382 = vmax.f32 %v339, %v343
    %v383 = vmax.f32 %v341, %v345
    %v384 = vmax.f32 %v382, %v383
    %v385 = vrot.slane %v384, 4
    %v386 = vmax.f32 %v384, %v385
    %v387 = vrot.slane %v386, 2
    %v388 = vmax.f32 %v386, %v387
    %v389 = vrot.slane %v388, 1
    %v390 = vmax.f32 %v388, %v389
    %v391 = vmax.f32 %v340, %v344
    %v392 = vmax.f32 %v342, %v346
    %v393 = vmax.f32 %v391, %v392
    %v394 = vrot.slane %v393, 4
    %v395 = vmax.f32 %v393, %v394
    %v396 = vrot.slane %v395, 2
    %v397 = vmax.f32 %v395, %v396
    %v398 = vrot.slane %v397, 1
    %v399 = vmax.f32 %v397, %v398
    %v400 = vld [vmem:[%s81] sm:$0xff]
    %v401 = vld [vmem:[%s81 + $0x8] sm:$0xff]
    %v402 = vld [vmem:[%s81 + $0x10] sm:$0xff]
    %v403 = vld [vmem:[%s81 + $0x18] sm:$0xff]
    %v404 = vld [vmem:[%s81 + $0x20] sm:$0xff]
    %v405 = vld [vmem:[%s81 + $0x28] sm:$0xff]
    %v406 = vld [vmem:[%s81 + $0x30] sm:$0xff]
    %v407 = vld [vmem:[%s81 + $0x38] sm:$0xff]
    %408 = vset.pattern.permute.xlu0 1
    %409 = vperm.xlu0 %408, %v273
    %v410 = vpop.permute.xlu0 %409
    %412 = vset.pattern.permute.xlu0 1
    %413 = vperm.xlu0 %412, %v288
    %v414 = vpop.permute.xlu0 %413
    %416 = vset.pattern.permute.xlu0 1
    %417 = vperm.xlu0 %416, %v303
    %v418 = vpop.permute.xlu0 %417
    %420 = vset.pattern.permute.xlu0 1
    %421 = vperm.xlu0 %420, %v318
    %v422 = vpop.permute.xlu0 %421
    %v424 = vmul.f32 %v400, %v410
    %v425 = vmul.f32 %v401, %v410
    %v426 = vmul.f32 %v402, %v414
    %v427 = vmul.f32 %v403, %v414
    %v428 = vmul.f32 %v404, %v418
    %v429 = vmul.f32 %v405, %v418
    %v430 = vmul.f32 %v406, %v422
    %v431 = vmul.f32 %v407, %v422
    %s432 = scalar_lea.vmem [#allocation7], 64
    %433 = vst [vmem:[%s432] sm:$0xff] %v424
    %434 = vst [vmem:[%s432 + $0x8] sm:$0xff] %v425
    %435 = vst [vmem:[%s432 + $0x10] sm:$0xff] %v426
    %436 = vst [vmem:[%s432 + $0x18] sm:$0xff] %v427
    %437 = vst [vmem:[%s432 + $0x20] sm:$0xff] %v428
    %438 = vst [vmem:[%s432 + $0x28] sm:$0xff] %v429
    %439 = vst [vmem:[%s432 + $0x30] sm:$0xff] %v430
    %440 = vst [vmem:[%s432 + $0x38] sm:$0xff] %v431
    %v441 = vadd.f32 %v424, %v426
    %v442 = vadd.f32 %v441, %v428
    %v443 = vadd.f32 %v442, %v430
    %v444 = vrot.slane %v443, 4
    %v445 = vadd.f32 %v443, %v444
    %v446 = vrot.slane %v445, 2
    %v447 = vadd.f32 %v445, %v446
    %v448 = vrot.slane %v447, 1
    %v449 = vadd.f32 %v447, %v448
    %v450 = vadd.f32 %v425, %v427
    %v451 = vadd.f32 %v450, %v429
    %v452 = vadd.f32 %v451, %v431
    %v453 = vrot.slane %v452, 4
    %v454 = vadd.f32 %v452, %v453
    %v455 = vrot.slane %v454, 2
    %v456 = vadd.f32 %v454, %v455
    %v457 = vrot.slane %v456, 1
    %v458 = vadd.f32 %v456, %v457
    %v459 = vmul.f32 %v449, %v379
    %v460 = vmul.f32 %v458, %v379
    %v461 = vmax.f32 %v424, %v428
    %v462 = vmax.f32 %v426, %v430
    %v463 = vmax.f32 %v461, %v462
    %v464 = vrot.slane %v463, 4
    %v465 = vmax.f32 %v463, %v464
    %v466 = vrot.slane %v465, 2
    %v467 = vmax.f32 %v465, %v466
    %v468 = vrot.slane %v467, 1
    %v469 = vmax.f32 %v467, %v468
    %v470 = vmax.f32 %v425, %v429
    %v471 = vmax.f32 %v427, %v431
    %v472 = vmax.f32 %v470, %v471
    %v473 = vrot.slane %v472, 4
    %v474 = vmax.f32 %v472, %v473
    %v475 = vrot.slane %v474, 2
    %v476 = vmax.f32 %v474, %v475
    %v477 = vrot.slane %v476, 1
    %v478 = vmax.f32 %v476, %v477
    %v483 = vrot.slane %v459, 7
    %v484 = vrot.slane %v460, 7
    %v485 = vrot.slane %v469, 7
    %v486 = vrot.slane %v478, 7
    %vm491 = vcmask 1040384
    %v492 = vsel %vm491, %v380, %v483
    %v493 = vsel %vm491, %v381, %v484
    %v494 = vsel %vm491, %v390, %v485
    %v495 = vsel %vm491, %v399, %v486
    %v496 = vld [vmem:[#allocation5] sm:$0xff]
    %v497 = vld [vmem:[#allocation5 + $0x8] sm:$0xff]
    %v498 = vld [vmem:[#allocation5 + $0x10] sm:$0xff]
    %v499 = vld [vmem:[#allocation5 + $0x18] sm:$0xff]
    %v500 = vld [vmem:[#allocation5 + $0x20] sm:$0xff]
    %v501 = vld [vmem:[#allocation5 + $0x28] sm:$0xff]
    %v502 = vld [vmem:[#allocation5 + $0x30] sm:$0xff]
    %v503 = vld [vmem:[#allocation5 + $0x38] sm:$0xff]
    %v504 = vld [vmem:[#allocation5 + $0x40] sm:$0xff]
    %v505 = vld [vmem:[#allocation5 + $0x48] sm:$0xff]
    %v506 = vld [vmem:[#allocation5 + $0x50] sm:$0xff]
    %v507 = vld [vmem:[#allocation5 + $0x58] sm:$0xff]
    %v508 = vld [vmem:[#allocation5 + $0x60] sm:$0xff]
    %v509 = vld [vmem:[#allocation5 + $0x68] sm:$0xff]
    %v510 = vld [vmem:[#allocation5 + $0x70] sm:$0xff]
    %v511 = vld [vmem:[#allocation5 + $0x78] sm:$0xff]
    %v512 = vld [vmem:[#allocation5 + $0x80] sm:$0xff]
    %v513 = vld [vmem:[#allocation5 + $0x88] sm:$0xff]
    %v514 = vld [vmem:[#allocation5 + $0x90] sm:$0xff]
    %v515 = vld [vmem:[#allocation5 + $0x98] sm:$0xff]
    %v516 = vld [vmem:[#allocation5 + $0xa0] sm:$0xff]
    %v517 = vld [vmem:[#allocation5 + $0xa8] sm:$0xff]
    %v518 = vld [vmem:[#allocation5 + $0xb0] sm:$0xff]
    %v519 = vld [vmem:[#allocation5 + $0xb8] sm:$0xff]
    %v520 = vld [vmem:[#allocation5 + $0xc0] sm:$0xff]
    %v521 = vld [vmem:[#allocation5 + $0xc8] sm:$0xff]
    %v522 = vld [vmem:[#allocation5 + $0xd0] sm:$0xff]
    %v523 = vld [vmem:[#allocation5 + $0xd8] sm:$0xff]
    %v524 = vld [vmem:[#allocation5 + $0xe0] sm:$0xff]
    %v525 = vld [vmem:[#allocation5 + $0xe8] sm:$0xff]
    %v526 = vld [vmem:[#allocation5 + $0xf0] sm:$0xff]
    %v527 = vld [vmem:[#allocation5 + $0xf8] sm:$0xff]
    %v528 = vld [vmem:[#allocation5 + $0x100] sm:$0xff]
    %v529 = vld [vmem:[#allocation5 + $0x108] sm:$0xff]
    %v530 = vld [vmem:[#allocation5 + $0x110] sm:$0xff]
    %v531 = vld [vmem:[#allocation5 + $0x118] sm:$0xff]
    %v532 = vld [vmem:[#allocation5 + $0x120] sm:$0xff]
    %v533 = vld [vmem:[#allocation5 + $0x128] sm:$0xff]
    %v534 = vld [vmem:[#allocation5 + $0x130] sm:$0xff]
    %v535 = vld [vmem:[#allocation5 + $0x138] sm:$0xff]
    %v536 = vld [vmem:[#allocation5 + $0x140] sm:$0xff]
    %v537 = vld [vmem:[#allocation5 + $0x148] sm:$0xff]
    %v538 = vld [vmem:[#allocation5 + $0x150] sm:$0xff]
    %v539 = vld [vmem:[#allocation5 + $0x158] sm:$0xff]
    %v540 = vld [vmem:[#allocation5 + $0x160] sm:$0xff]
    %v541 = vld [vmem:[#allocation5 + $0x168] sm:$0xff]
    %v542 = vld [vmem:[#allocation5 + $0x170] sm:$0xff]
    %v543 = vld [vmem:[#allocation5 + $0x178] sm:$0xff]
    %v544 = vld [vmem:[#allocation5 + $0x180] sm:$0xff]
    %v545 = vld [vmem:[#allocation5 + $0x188] sm:$0xff]
    %v546 = vld [vmem:[#allocation5 + $0x190] sm:$0xff]
    %v547 = vld [vmem:[#allocation5 + $0x198] sm:$0xff]
    %v548 = vld [vmem:[#allocation5 + $0x1a0] sm:$0xff]
    %v549 = vld [vmem:[#allocation5 + $0x1a8] sm:$0xff]
    %v550 = vld [vmem:[#allocation5 + $0x1b0] sm:$0xff]
    %v551 = vld [vmem:[#allocation5 + $0x1b8] sm:$0xff]
    %v552 = vld [vmem:[#allocation5 + $0x1c0] sm:$0xff]
    %v553 = vld [vmem:[#allocation5 + $0x1c8] sm:$0xff]
    %v554 = vld [vmem:[#allocation5 + $0x1d0] sm:$0xff]
    %v555 = vld [vmem:[#allocation5 + $0x1d8] sm:$0xff]
    %v556 = vld [vmem:[#allocation5 + $0x1e0] sm:$0xff]
    %v557 = vld [vmem:[#allocation5 + $0x1e8] sm:$0xff]
    %v558 = vld [vmem:[#allocation5 + $0x1f0] sm:$0xff]
    %v559 = vld [vmem:[#allocation5 + $0x1f8] sm:$0xff]
    %v560 = vld [vmem:[#allocation5 + $0x200] sm:$0xff]
    %v561 = vld [vmem:[#allocation5 + $0x208] sm:$0xff]
    %v562 = vld [vmem:[#allocation5 + $0x210] sm:$0xff]
    %v563 = vld [vmem:[#allocation5 + $0x218] sm:$0xff]
    %v564 = vld [vmem:[#allocation5 + $0x220] sm:$0xff]
    %v565 = vld [vmem:[#allocation5 + $0x228] sm:$0xff]
    %v566 = vld [vmem:[#allocation5 + $0x230] sm:$0xff]
    %v567 = vld [vmem:[#allocation5 + $0x238] sm:$0xff]
    %v568 = vld [vmem:[#allocation5 + $0x240] sm:$0xff]
    %v569 = vld [vmem:[#allocation5 + $0x248] sm:$0xff]
    %v570 = vld [vmem:[#allocation5 + $0x250] sm:$0xff]
    %v571 = vld [vmem:[#allocation5 + $0x258] sm:$0xff]
    %v572 = vld [vmem:[#allocation5 + $0x260] sm:$0xff]
    %v573 = vld [vmem:[#allocation5 + $0x268] sm:$0xff]
    %v574 = vld [vmem:[#allocation5 + $0x270] sm:$0xff]
    %v575 = vld [vmem:[#allocation5 + $0x278] sm:$0xff]
    %v576 = vld [vmem:[#allocation5 + $0x280] sm:$0xff]
    %v577 = vld [vmem:[#allocation5 + $0x288] sm:$0xff]
    %v578 = vld [vmem:[#allocation5 + $0x290] sm:$0xff]
    %v579 = vld [vmem:[#allocation5 + $0x298] sm:$0xff]
    %v580 = vld [vmem:[#allocation5 + $0x2a0] sm:$0xff]
    %v581 = vld [vmem:[#allocation5 + $0x2a8] sm:$0xff]
    %v582 = vld [vmem:[#allocation5 + $0x2b0] sm:$0xff]
    %v583 = vld [vmem:[#allocation5 + $0x2b8] sm:$0xff]
    %v584 = vld [vmem:[#allocation5 + $0x2c0] sm:$0xff]
    %v585 = vld [vmem:[#allocation5 + $0x2c8] sm:$0xff]
    %v586 = vld [vmem:[#allocation5 + $0x2d0] sm:$0xff]
    %v587 = vld [vmem:[#allocation5 + $0x2d8] sm:$0xff]
    %v588 = vld [vmem:[#allocation5 + $0x2e0] sm:$0xff]
    %v589 = vld [vmem:[#allocation5 + $0x2e8] sm:$0xff]
    %v590 = vld [vmem:[#allocation5 + $0x2f0] sm:$0xff]
    %v591 = vld [vmem:[#allocation5 + $0x2f8] sm:$0xff]
    %v592 = vld [vmem:[#allocation5 + $0x300] sm:$0xff]
    %v593 = vld [vmem:[#allocation5 + $0x308] sm:$0xff]
    %v594 = vld [vmem:[#allocation5 + $0x310] sm:$0xff]
    %v595 = vld [vmem:[#allocation5 + $0x318] sm:$0xff]
    %v596 = vld [vmem:[#allocation5 + $0x320] sm:$0xff]
    %v597 = vld [vmem:[#allocation5 + $0x328] sm:$0xff]
    %v598 = vld [vmem:[#allocation5 + $0x330] sm:$0xff]
    %v599 = vld [vmem:[#allocation5 + $0x338] sm:$0xff]
    %v600 = vld [vmem:[#allocation5 + $0x340] sm:$0xff]
    %v601 = vld [vmem:[#allocation5 + $0x348] sm:$0xff]
    %v602 = vld [vmem:[#allocation5 + $0x350] sm:$0xff]
    %v603 = vld [vmem:[#allocation5 + $0x358] sm:$0xff]
    %v604 = vld [vmem:[#allocation5 + $0x360] sm:$0xff]
    %v605 = vld [vmem:[#allocation5 + $0x368] sm:$0xff]
    %v606 = vld [vmem:[#allocation5 + $0x370] sm:$0xff]
    %v607 = vld [vmem:[#allocation5 + $0x378] sm:$0xff]
    %v608 = vld [vmem:[#allocation5 + $0x380] sm:$0xff]
    %v609 = vld [vmem:[#allocation5 + $0x388] sm:$0xff]
    %v610 = vld [vmem:[#allocation5 + $0x390] sm:$0xff]
    %v611 = vld [vmem:[#allocation5 + $0x398] sm:$0xff]
    %v612 = vld [vmem:[#allocation5 + $0x3a0] sm:$0xff]
    %v613 = vld [vmem:[#allocation5 + $0x3a8] sm:$0xff]
    %v614 = vld [vmem:[#allocation5 + $0x3b0] sm:$0xff]
    %v615 = vld [vmem:[#allocation5 + $0x3b8] sm:$0xff]
    %v616 = vld [vmem:[#allocation5 + $0x3c0] sm:$0xff]
    %v617 = vld [vmem:[#allocation5 + $0x3c8] sm:$0xff]
    %v618 = vld [vmem:[#allocation5 + $0x3d0] sm:$0xff]
    %v619 = vld [vmem:[#allocation5 + $0x3d8] sm:$0xff]
    %v620 = vld [vmem:[#allocation5 + $0x3e0] sm:$0xff]
    %v621 = vld [vmem:[#allocation5 + $0x3e8] sm:$0xff]
    %v622 = vld [vmem:[#allocation5 + $0x3f0] sm:$0xff]
    %v623 = vld [vmem:[#allocation5 + $0x3f8] sm:$0xff]
    %624 = vmatpush.msra.mxu0 %v526
    %625 = vmatpush.msra.mxu0 %v524
    %626 = vmatpush.msra.mxu0 %v522
    %627 = vmatpush.msra.mxu0 %v520
    %628 = vmatpush.msra.mxu0 %v518
    %629 = vmatpush.msra.mxu0 %v516
    %630 = vmatpush.msra.mxu0 %v514
    %631 = vmatpush.msra.mxu0 %v512
    %632 = vmatpush.msra.mxu0 %v510
    %633 = vmatpush.msra.mxu0 %v508
    %634 = vmatpush.msra.mxu0 %v506
    %635 = vmatpush.msra.mxu0 %v504
    %636 = vmatpush.msra.mxu0 %v502
    %637 = vmatpush.msra.mxu0 %v500
    %638 = vmatpush.msra.mxu0 %v498
    %639 = vmatpush.msra.mxu0 %v496
    %640 = vmatmul.f32.gmra.mxu0 %v492
    %v641 = vpop.f32.mrf.mxu0
    %v642 = vadd.f32 0.0, %v641
    %643 = vdwg.mxu0
    %644 = vmatpush.msra.mxu0 %v558
    %645 = vmatpush.msra.mxu0 %v556
    %646 = vmatpush.msra.mxu0 %v554
    %647 = vmatpush.msra.mxu0 %v552
    %648 = vmatpush.msra.mxu0 %v550
    %649 = vmatpush.msra.mxu0 %v548
    %650 = vmatpush.msra.mxu0 %v546
    %651 = vmatpush.msra.mxu0 %v544
    %652 = vmatpush.msra.mxu0 %v542
    %653 = vmatpush.msra.mxu0 %v540
    %654 = vmatpush.msra.mxu0 %v538
    %655 = vmatpush.msra.mxu0 %v536
    %656 = vmatpush.msra.mxu0 %v534
    %657 = vmatpush.msra.mxu0 %v532
    %658 = vmatpush.msra.mxu0 %v530
    %659 = vmatpush.msra.mxu0 %v528
    %660 = vmatmul.f32.gmra.mxu0 %v493
    %v661 = vpop.f32.mrf.mxu0
    %v662 = vadd.f32 %v642, %v661
    %663 = vdwg.mxu0
    %664 = vmatpush.msra.mxu0 %v590
    %665 = vmatpush.msra.mxu0 %v588
    %666 = vmatpush.msra.mxu0 %v586
    %667 = vmatpush.msra.mxu0 %v584
    %668 = vmatpush.msra.mxu0 %v582
    %669 = vmatpush.msra.mxu0 %v580
    %670 = vmatpush.msra.mxu0 %v578
    %671 = vmatpush.msra.mxu0 %v576
    %672 = vmatpush.msra.mxu0 %v574
    %673 = vmatpush.msra.mxu0 %v572
    %674 = vmatpush.msra.mxu0 %v570
    %675 = vmatpush.msra.mxu0 %v568
    %676 = vmatpush.msra.mxu0 %v566
    %677 = vmatpush.msra.mxu0 %v564
    %678 = vmatpush.msra.mxu0 %v562
    %679 = vmatpush.msra.mxu0 %v560
    %680 = vmatmul.f32.gmra.mxu0 %v494
    %v681 = vpop.f32.mrf.mxu0
    %v682 = vadd.f32 %v662, %v681
    %683 = vdwg.mxu0
    %684 = vmatpush.msra.mxu0 %v622
    %685 = vmatpush.msra.mxu0 %v620
    %686 = vmatpush.msra.mxu0 %v618
    %687 = vmatpush.msra.mxu0 %v616
    %688 = vmatpush.msra.mxu0 %v614
    %689 = vmatpush.msra.mxu0 %v612
    %690 = vmatpush.msra.mxu0 %v610
    %691 = vmatpush.msra.mxu0 %v608
    %692 = vmatpush.msra.mxu0 %v606
    %693 = vmatpush.msra.mxu0 %v604
    %694 = vmatpush.msra.mxu0 %v602
    %695 = vmatpush.msra.mxu0 %v600
    %696 = vmatpush.msra.mxu0 %v598
    %697 = vmatpush.msra.mxu0 %v596
    %698 = vmatpush.msra.mxu0 %v594
    %699 = vmatpush.msra.mxu0 %v592
    %700 = vmatmul.f32.gmra.mxu0 %v495
    %v701 = vpop.f32.mrf.mxu0
    %v702 = vadd.f32 %v682, %v701
    %703 = vdwg.mxu0
    %704 = vmatpush.msra.mxu0 %v527
    %705 = vmatpush.msra.mxu0 %v525
    %706 = vmatpush.msra.mxu0 %v523
    %707 = vmatpush.msra.mxu0 %v521
    %708 = vmatpush.msra.mxu0 %v519
    %709 = vmatpush.msra.mxu0 %v517
    %710 = vmatpush.msra.mxu0 %v515
    %711 = vmatpush.msra.mxu0 %v513
    %712 = vmatpush.msra.mxu0 %v511
    %713 = vmatpush.msra.mxu0 %v509
    %714 = vmatpush.msra.mxu0 %v507
    %715 = vmatpush.msra.mxu0 %v505
    %716 = vmatpush.msra.mxu0 %v503
    %717 = vmatpush.msra.mxu0 %v501
    %718 = vmatpush.msra.mxu0 %v499
    %719 = vmatpush.msra.mxu0 %v497
    %720 = vmatmul.f32.gmra.mxu0 %v492
    %v721 = vpop.f32.mrf.mxu0
    %v722 = vadd.f32 0.0, %v721
    %723 = vdwg.mxu0
    %724 = vmatpush.msra.mxu0 %v559
    %725 = vmatpush.msra.mxu0 %v557
    %726 = vmatpush.msra.mxu0 %v555
    %727 = vmatpush.msra.mxu0 %v553
    %728 = vmatpush.msra.mxu0 %v551
    %729 = vmatpush.msra.mxu0 %v549
    %730 = vmatpush.msra.mxu0 %v547
    %731 = vmatpush.msra.mxu0 %v545
    %732 = vmatpush.msra.mxu0 %v543
    %733 = vmatpush.msra.mxu0 %v541
    %734 = vmatpush.msra.mxu0 %v539
    %735 = vmatpush.msra.mxu0 %v537
    %736 = vmatpush.msra.mxu0 %v535
    %737 = vmatpush.msra.mxu0 %v533
    %738 = vmatpush.msra.mxu0 %v531
    %739 = vmatpush.msra.mxu0 %v529
    %740 = vmatmul.f32.gmra.mxu0 %v493
    %v741 = vpop.f32.mrf.mxu0
    %v742 = vadd.f32 %v722, %v741
    %743 = vdwg.mxu0
    %744 = vmatpush.msra.mxu0 %v591
    %745 = vmatpush.msra.mxu0 %v589
    %746 = vmatpush.msra.mxu0 %v587
    %747 = vmatpush.msra.mxu0 %v585
    %748 = vmatpush.msra.mxu0 %v583
    %749 = vmatpush.msra.mxu0 %v581
    %750 = vmatpush.msra.mxu0 %v579
    %751 = vmatpush.msra.mxu0 %v577
    %752 = vmatpush.msra.mxu0 %v575
    %753 = vmatpush.msra.mxu0 %v573
    %754 = vmatpush.msra.mxu0 %v571
    %755 = vmatpush.msra.mxu0 %v569
    %756 = vmatpush.msra.mxu0 %v567
    %757 = vmatpush.msra.mxu0 %v565
    %758 = vmatpush.msra.mxu0 %v563
    %759 = vmatpush.msra.mxu0 %v561
    %760 = vmatmul.f32.gmra.mxu0 %v494
    %v761 = vpop.f32.mrf.mxu0
    %v762 = vadd.f32 %v742, %v761
    %763 = vdwg.mxu0
    %764 = vmatpush.msra.mxu0 %v623
    %765 = vmatpush.msra.mxu0 %v621
    %766 = vmatpush.msra.mxu0 %v619
    %767 = vmatpush.msra.mxu0 %v617
    %768 = vmatpush.msra.mxu0 %v615
    %769 = vmatpush.msra.mxu0 %v613
    %770 = vmatpush.msra.mxu0 %v611
    %771 = vmatpush.msra.mxu0 %v609
    %772 = vmatpush.msra.mxu0 %v607
    %773 = vmatpush.msra.mxu0 %v605
    %774 = vmatpush.msra.mxu0 %v603
    %775 = vmatpush.msra.mxu0 %v601
    %776 = vmatpush.msra.mxu0 %v599
    %777 = vmatpush.msra.mxu0 %v597
    %778 = vmatpush.msra.mxu0 %v595
    %779 = vmatpush.msra.mxu0 %v593
    %780 = vmatmul.f32.gmra.mxu0 %v495
    %v781 = vpop.f32.mrf.mxu0
    %v782 = vadd.f32 %v762, %v781
    %783 = vdwg.mxu0
    %v784 = vxor.u32 %v702, 2147483648
    %v785 = vxor.u32 %v782, 2147483648
    %v786 = vmul.f32 %v784, 1.442695
    %v787 = vpow.pop %v786
    %v788 = vmul.f32 %v785, 1.442695
    %v789 = vpow.pop %v788
    %v790 = vadd.f32 %v787, 1.0
    %v791 = vadd.f32 %v789, 1.0
    %v792 = vrcp.pop %v790
    %v793 = vmul.f32 %v790, %v792
    %v794 = vsub.f32 1.0, %v793
    %v795 = vmul.f32 %v792, %v794
    %v796 = vadd.f32 %v792, %v795
    %vm797 = vweird.f32 %v790
    %vm798 = vweird.f32 %v792
    %vm799 = vmor %vm797, %vm798
    %v800 = vsel %vm799, %v792, %v796
    %v801 = vand.u32 2147483647, %v790
    %vm802 = vcmp.eq.f32.partialorder %v801, 8.507059e+37
    %v803 = vand.u32 %v790, 2147483648
    %v804 = vor.u32 1.1754944e-38, %v803
    %v805 = vsel %vm802, %v804, %v800
    %v806 = vmul.f32 1.0, %v805
    %v807 = vrcp.pop %v791
    %v808 = vmul.f32 %v791, %v807
    %v809 = vsub.f32 1.0, %v808
    %v810 = vmul.f32 %v807, %v809
    %v811 = vadd.f32 %v807, %v810
    %vm812 = vweird.f32 %v791
    %vm813 = vweird.f32 %v807
    %vm814 = vmor %vm812, %vm813
    %v815 = vsel %vm814, %v807, %v811
    %v816 = vand.u32 2147483647, %v791
    %vm817 = vcmp.eq.f32.partialorder %v816, 8.507059e+37
    %v818 = vand.u32 %v791, 2147483648
    %v819 = vor.u32 1.1754944e-38, %v818
    %v820 = vsel %vm817, %v819, %v815
    %v821 = vmul.f32 1.0, %v820
    %v822 = vld [vmem:[#allocation7] sm:$0xff]
    %v823 = vld [vmem:[#allocation7 + $0x8] sm:$0xff]
    %v824 = vld [vmem:[#allocation7 + $0x10] sm:$0xff]
    %v825 = vld [vmem:[#allocation7 + $0x18] sm:$0xff]
    %v826 = vld [vmem:[#allocation7 + $0x20] sm:$0xff]
    %v827 = vld [vmem:[#allocation7 + $0x28] sm:$0xff]
    %v828 = vld [vmem:[#allocation7 + $0x30] sm:$0xff]
    %v829 = vld [vmem:[#allocation7 + $0x38] sm:$0xff]
    %v830 = vperm.slane %v806, 0
    %v831 = vperm.slane %v821, 0
    %v832 = vmul.f32 %v822, %v830
    %v833 = vmul.f32 %v823, %v831
    %v834 = vmul.f32 %v824, %v830
    %v835 = vmul.f32 %v825, %v831
    %v836 = vmul.f32 %v826, %v830
    %v837 = vmul.f32 %v827, %v831
    %v838 = vmul.f32 %v828, %v830
    %v839 = vmul.f32 %v829, %v831
    %840 = vst [vmem:[#allocation7] sm:$0xff] %v832
    %841 = vst [vmem:[#allocation7 + $0x8] sm:$0xff] %v833
    %842 = vst [vmem:[#allocation7 + $0x10] sm:$0xff] %v834
    %843 = vst [vmem:[#allocation7 + $0x18] sm:$0xff] %v835
    %844 = vst [vmem:[#allocation7 + $0x20] sm:$0xff] %v836
    %845 = vst [vmem:[#allocation7 + $0x28] sm:$0xff] %v837
    %846 = vst [vmem:[#allocation7 + $0x30] sm:$0xff] %v838
    %847 = vst [vmem:[#allocation7 + $0x38] sm:$0xff] %v839
    %v848 = vld [vmem:[%s432] sm:$0xff]
    %v849 = vld [vmem:[%s432 + $0x8] sm:$0xff]
    %v850 = vld [vmem:[%s432 + $0x10] sm:$0xff]
    %v851 = vld [vmem:[%s432 + $0x18] sm:$0xff]
    %v852 = vld [vmem:[%s432 + $0x20] sm:$0xff]
    %v853 = vld [vmem:[%s432 + $0x28] sm:$0xff]
    %v854 = vld [vmem:[%s432 + $0x30] sm:$0xff]
    %v855 = vld [vmem:[%s432 + $0x38] sm:$0xff]
    %v856 = vperm.slane %v806, 1
    %v857 = vperm.slane %v821, 1
    %v858 = vmul.f32 %v848, %v856
    %v859 = vmul.f32 %v849, %v857
    %v860 = vmul.f32 %v850, %v856
    %v861 = vmul.f32 %v851, %v857
    %v862 = vmul.f32 %v852, %v856
    %v863 = vmul.f32 %v853, %v857
    %v864 = vmul.f32 %v854, %v856
    %v865 = vmul.f32 %v855, %v857
    %866 = vst [vmem:[%s432] sm:$0xff] %v858
    %867 = vst [vmem:[%s432 + $0x8] sm:$0xff] %v859
    %868 = vst [vmem:[%s432 + $0x10] sm:$0xff] %v860
    %869 = vst [vmem:[%s432 + $0x18] sm:$0xff] %v861
    %870 = vst [vmem:[%s432 + $0x20] sm:$0xff] %v862
    %871 = vst [vmem:[%s432 + $0x28] sm:$0xff] %v863
    %872 = vst [vmem:[%s432 + $0x30] sm:$0xff] %v864
    %873 = vst [vmem:[%s432 + $0x38] sm:$0xff] %v865
    // Predicated region
    $region26: #{tpu_custom_call.1} parent=1 // pred_check
      _
    $region27: #{tpu_custom_call.1} parent=1 // pred_check_branch
      %875 = sbr.rel (0) target = $region29
    $region28: #{tpu_custom_call.1} parent=1 // pred_region
      %877 = vsyncadd [#allocation4], 0
      %s878 = sshll.u32 [#allocation7], 4
      %s879 = int_to_ptr.vmem [resolvable:$true] %s878
      %s880 = sshll.u32 %s4, 4
      %s881 = int_to_ptr.hbm [resolvable:$true] %s880
      %886 = dma.vmem_to_hbm [thread:$0]  %s879, 2048, %s881, [#allocation4], 256, 256, 16
    $region29: #{tpu_custom_call.1} parent=1 // pred_fallthru
      _
    // Predicated region
    $region30: #{tpu_custom_call.1} parent=1 // pred_check
      _
    $region31: #{tpu_custom_call.1} parent=1 // pred_check_branch
      %888 = sbr.rel (0) target = $region33
    $region32: #{tpu_custom_call.1} parent=1 // pred_region
      %890 = dma.done [#allocation4], 2048
    $region33: #{tpu_custom_call.1} parent=1 // pred_fallthru
      _
    %891 = vsyncpa [#allocation3], 1
    %892 = vsyncpa [#allocation6], 1
    %893 = vsyncpa [#allocation4], 1

</llo_original>
